<compile_context>
chip_gen: v7x
topology: tpu7x:2x2x1
jax: 0.10.0
libtpu: 0.0.40
codegen_flags: <defaults>
</compile_context>

<pallas_src>
import jax
import jax.numpy as jnp
from jax import lax
from jax.experimental import pallas as pl
from jax.experimental.pallas import tpu as pltpu


def _round_up(n, m):
    return ((n + m - 1) // m) * m


def _leaky_relu_05(x):
    # nn.LeakyReLU(0.5): x if x >= 0 else 0.5 * x
    return jnp.where(x >= 0, x, 0.5 * x)


def _ae_kernel(x_ref,
               ew1_ref, eb1_ref, ew2_ref, eb2_ref, ew3_ref, eb3_ref,
               dw1_ref, db1_ref, dw2_ref, db2_ref, dw3_ref, db3_ref,
               xgen_ref, z_ref):
    """Fused encoder+decoder on one batch tile.

    x_ref:   [T, input_dim]  natural layout (contiguous rows in HBM)
    weights: [out, in] f32, biases: [out, 1] f32
    outputs: transposed [features, T] so stores are lane-dense.
    """
    x = x_ref[...]                                   # [T, input_dim] f32

    def layer_t(w_ref, b_ref, a_t):
        # a_t: [in, T]; standard MXU matmul with f32 accumulation.
        return (jnp.dot(w_ref[...], a_t, preferred_element_type=jnp.float32)
                + b_ref[...])

    # ----- Encoder -----
    # First layer: contract x's feature axis against W's input axis (A @ B.T)
    # so the activation lands directly in the transposed [hidden, T] layout
    # (batch on lanes) without any host- or kernel-side transpose of x.
    h = _leaky_relu_05(
        lax.dot_general(ew1_ref[...], x, (((1,), (1,)), ((), ())),
                        preferred_element_type=jnp.float32) + eb1_ref[...])
    h = _leaky_relu_05(layer_t(ew2_ref, eb2_ref, h))
    z = layer_t(ew3_ref, eb3_ref, h)                 # [z_dim, T]
    z_ref[...] = z.astype(z_ref.dtype)

    # ----- Decoder -----
    g = _leaky_relu_05(layer_t(dw1_ref, db1_ref, z))
    g = _leaky_relu_05(layer_t(dw2_ref, db2_ref, g))
    xgen_ref[...] = layer_t(dw3_ref, db3_ref, g).astype(xgen_ref.dtype)


def ae_forward(x, params, *, batch_tile=None):
    """Fused AE forward. Returns (x_gen, x, z) matching the PyTorch module."""
    B, input_dim = x.shape
    z_dim = params["ew3"].shape[1]

    # Batch tile: lane-dense multiple of 128, large enough (default 1024) to
    # amortize the per-grid-step pipeline overhead, but capped so there are
    # >=2 grid steps once the 128-rounded batch reaches 256 (keeps both v7x
    # TensorCores busy under dimension_semantics=("parallel",)).
    if batch_tile is None:
        batch_tile = 1024
    batch_tile = max(128, _round_up(batch_tile, 128))
    b128 = _round_up(B, 128)
    if b128 >= 256:
        batch_tile = min(batch_tile, _round_up(b128 // 2, 128))
    else:
        batch_tile = min(batch_tile, b128)
    B_pad = _round_up(B, batch_tile)
    grid = (B_pad // batch_tile,)

    # Single cheap pad of the batch (zeros); no transpose / dtype-cast passes.
    x_pad = x.astype(jnp.float32)
    if B_pad != B:
        x_pad = jnp.pad(x_pad, ((0, B_pad - B), (0, 0)))

    def wt(name):  # weight as [out, in] f32 for the MXU
        return params[name].T.astype(jnp.float32)

    def bt(name):  # bias as [out, 1] f32, broadcast across batch lanes
        return params[name].T.astype(jnp.float32)

    def batch_in_map(i):
        return (i, 0)

    def batch_out_map(i):
        return (0, i)

    def const_map(i):
        return (0, 0)

    operands = [
        x_pad,
        wt("ew1"), bt("eb1"), wt("ew2"), bt("eb2"), wt("ew3"), bt("eb3"),
        wt("dw1"), bt("db1"), wt("dw2"), bt("db2"), wt("dw3"), bt("db3"),
    ]

    in_specs = ([pl.BlockSpec((batch_tile, input_dim), batch_in_map)]
                + [pl.BlockSpec(a.shape, const_map) for a in operands[1:]])
    out_specs = [
        pl.BlockSpec((input_dim, batch_tile), batch_out_map),  # x_gen^T
        pl.BlockSpec((z_dim, batch_tile), batch_out_map),      # z^T
    ]
    out_shape = [
        jax.ShapeDtypeStruct((input_dim, B_pad), jnp.float32),
        jax.ShapeDtypeStruct((z_dim, B_pad), jnp.float32),
    ]

    xgen_t, z_t = pl.pallas_call(
        _ae_kernel,
        grid=grid,
        in_specs=in_specs,
        out_specs=out_specs,
        out_shape=out_shape,
        compiler_params=pltpu.CompilerParams(
            dimension_semantics=("parallel",)),
    )(*operands)

    # Module contract is [batch, feature]; these transposes are plain layout
    # plumbing over small tensors.
    # TODO(synk): consumers that accept [feature, batch] outputs can take
    # xgen_t / z_t directly and skip these two extra HBM passes.
    x_gen = xgen_t.T[:B]
    z = z_t.T[:B]
    return x_gen, x, z


def init_ae_params(key, input_dim, hidden_dim, z_dim):
    """Deterministic parameter init. Weights stored as [in, out], biases [1, out]."""
    keys = jax.random.split(key, 12)

    def linear(kw, kb, fan_in, fan_out):
        bound = 1.0 / jnp.sqrt(fan_in)
        w = jax.random.uniform(kw, (fan_in, fan_out), jnp.float32, -bound, bound)
        b = jax.random.uniform(kb, (1, fan_out), jnp.float32, -bound, bound)
        return w, b

    ew1, eb1 = linear(keys[0], keys[1], input_dim, hidden_dim)
    ew2, eb2 = linear(keys[2], keys[3], hidden_dim, hidden_dim)
    ew3, eb3 = linear(keys[4], keys[5], hidden_dim, z_dim)
    dw1, db1 = linear(keys[6], keys[7], z_dim, hidden_dim)
    dw2, db2 = linear(keys[8], keys[9], hidden_dim, hidden_dim)
    dw3, db3 = linear(keys[10], keys[11], hidden_dim, input_dim)

    return dict(ew1=ew1, eb1=eb1, ew2=ew2, eb2=eb2, ew3=ew3, eb3=eb3,
                dw1=dw1, db1=db1, dw2=dw2, db2=db2, dw3=dw3, db3=db3)


def ae_forward_ref(x, p):
    """Pure-JAX f32 reference mirroring the PyTorch module."""
    act = _leaky_relu_05
    h = act(x @ p["ew1"] + p["eb1"])
    h = act(h @ p["ew2"] + p["eb2"])
    z = h @ p["ew3"] + p["eb3"]
    g = act(z @ p["dw1"] + p["db1"])
    g = act(g @ p["dw2"] + p["db2"])
    x_gen = g @ p["dw3"] + p["db3"]
    return x_gen, x, z


if __name__ == "__main__":
    key = jax.random.PRNGKey(0)
    k_param, k_x1, k_x2 = jax.random.split(key, 3)

    input_dim, hidden_dim, z_dim = 16, 32, 8
    params = init_ae_params(k_param, input_dim, hidden_dim, z_dim)

    fwd = jax.jit(ae_forward)

    # Small batch (single lane-dense tile with batch padding) and a larger
    # batch (multi-step, megacore-parallel grid with padding to the tile).
    for batch, kx in ((8, k_x1), (384, k_x2)):
        x = jax.random.normal(kx, (batch, input_dim), jnp.float32)

        x_gen, x_out, z = fwd(x, params)
        jax.block_until_ready((x_gen, x_out, z))

        x_gen_ref, _, z_ref = ae_forward_ref(x, params)
        assert x_gen.shape == (batch, input_dim)
        assert z.shape == (batch, z_dim)
        assert x_out.shape == (batch, input_dim)
        assert bool(jnp.all(x_out == x))
        # f32 operands; allow slack for MXU multi-pass f32 matmul rounding.
        assert jnp.allclose(x_gen, x_gen_ref, atol=1e-2, rtol=1e-2)
        assert jnp.allclose(z, z_ref, atol=1e-2, rtol=1e-2)

    print("KERNEL_OK")
</pallas_src>

<mosaic_0001>
module attributes {stable_mosaic.version = 11 : i64} {
  func.func @_ae_kernel(%arg0: i32, %arg1: memref<128x16xf32, #tpu.memory_space<vmem>>, %arg2: memref<32x16xf32, #tpu.memory_space<vmem>>, %arg3: memref<32x1xf32, #tpu.memory_space<vmem>>, %arg4: memref<32x32xf32, #tpu.memory_space<vmem>>, %arg5: memref<32x1xf32, #tpu.memory_space<vmem>>, %arg6: memref<8x32xf32, #tpu.memory_space<vmem>>, %arg7: memref<8x1xf32, #tpu.memory_space<vmem>>, %arg8: memref<32x8xf32, #tpu.memory_space<vmem>>, %arg9: memref<32x1xf32, #tpu.memory_space<vmem>>, %arg10: memref<32x32xf32, #tpu.memory_space<vmem>>, %arg11: memref<32x1xf32, #tpu.memory_space<vmem>>, %arg12: memref<16x32xf32, #tpu.memory_space<vmem>>, %arg13: memref<16x1xf32, #tpu.memory_space<vmem>>, %arg14: memref<16x128xf32, #tpu.memory_space<vmem>>, %arg15: memref<8x128xf32, #tpu.memory_space<vmem>>) attributes {dimension_semantics = [#tpu.dimension_semantics<parallel>], iteration_bounds = array<i64: 1>, scalar_prefetch = 0 : i64, scratch_operands = 0 : i64, tpu.core_type = #tpu.core_type<tc>, window_params = [{transform_indices = @transform_0, window_bounds = array<i64: 128, 16>}, {pipeline_mode = #tpu.pipeline_mode<synchronous>, transform_indices = @transform_1, window_bounds = array<i64: 32, 16>}, {pipeline_mode = #tpu.pipeline_mode<synchronous>, transform_indices = @transform_2, window_bounds = array<i64: 32, 1>}, {pipeline_mode = #tpu.pipeline_mode<synchronous>, transform_indices = @transform_3, window_bounds = array<i64: 32, 32>}, {pipeline_mode = #tpu.pipeline_mode<synchronous>, transform_indices = @transform_4, window_bounds = array<i64: 32, 1>}, {pipeline_mode = #tpu.pipeline_mode<synchronous>, transform_indices = @transform_5, window_bounds = array<i64: 8, 32>}, {pipeline_mode = #tpu.pipeline_mode<synchronous>, transform_indices = @transform_6, window_bounds = array<i64: 8, 1>}, {pipeline_mode = #tpu.pipeline_mode<synchronous>, transform_indices = @transform_7, window_bounds = array<i64: 32, 8>}, {pipeline_mode = #tpu.pipeline_mode<synchronous>, transform_indices = @transform_8, window_bounds = array<i64: 32, 1>}, {pipeline_mode = #tpu.pipeline_mode<synchronous>, transform_indices = @transform_9, window_bounds = array<i64: 32, 32>}, {pipeline_mode = #tpu.pipeline_mode<synchronous>, transform_indices = @transform_10, window_bounds = array<i64: 32, 1>}, {pipeline_mode = #tpu.pipeline_mode<synchronous>, transform_indices = @transform_11, window_bounds = array<i64: 16, 32>}, {pipeline_mode = #tpu.pipeline_mode<synchronous>, transform_indices = @transform_12, window_bounds = array<i64: 16, 1>}, {transform_indices = @transform_13, window_bounds = array<i64: 16, 128>}, {transform_indices = @transform_14, window_bounds = array<i64: 8, 128>}]} {
    %c0 = arith.constant 0 : index
    %c0_0 = arith.constant 0 : index
    %0 = vector.load %arg1[%c0, %c0_0] : memref<128x16xf32, #tpu.memory_space<vmem>>, vector<128x16xf32>
    %c0_1 = arith.constant 0 : index
    %c0_2 = arith.constant 0 : index
    %1 = vector.load %arg2[%c0_1, %c0_2] : memref<32x16xf32, #tpu.memory_space<vmem>>, vector<32x16xf32>
    %cst = arith.constant dense<0.000000e+00> : vector<32x128xf32>
    %2 = tpu.matmul %1, %0, %cst {dimension_numbers = #tpu.dot_dimension_numbers<[1], [1], [0], [0], [0, 0, 1, 0], [], []>} : vector<32x16xf32>, vector<128x16xf32>, vector<32x128xf32> -> vector<32x128xf32>
    %c0_3 = arith.constant 0 : index
    %c0_4 = arith.constant 0 : index
    %3 = vector.load %arg3[%c0_3, %c0_4] : memref<32x1xf32, #tpu.memory_space<vmem>>, vector<32x1xf32>
    %4 = vector.broadcast %3 : vector<32x1xf32> to vector<32x128xf32>
    %5 = arith.addf %2, %4 : vector<32x128xf32>
    %cst_5 = arith.constant 0.000000e+00 : f32
    %6 = vector.broadcast %cst_5 : f32 to vector<32x128xf32>
    %7 = arith.cmpf oge, %5, %6 : vector<32x128xf32>
    %cst_6 = arith.constant 5.000000e-01 : f32
    %8 = vector.broadcast %cst_6 : f32 to vector<32x128xf32>
    %9 = arith.mulf %8, %5 : vector<32x128xf32>
    %10 = arith.select %7, %5, %9 : vector<32x128xi1>, vector<32x128xf32>
    %c0_7 = arith.constant 0 : index
    %c0_8 = arith.constant 0 : index
    %11 = vector.load %arg4[%c0_7, %c0_8] : memref<32x32xf32, #tpu.memory_space<vmem>>, vector<32x32xf32>
    %cst_9 = arith.constant dense<0.000000e+00> : vector<32x128xf32>
    %12 = tpu.matmul %11, %10, %cst_9 {dimension_numbers = #tpu.dot_dimension_numbers<[1], [0], [0], [1], [0, 0, 1, 1], [], []>} : vector<32x32xf32>, vector<32x128xf32>, vector<32x128xf32> -> vector<32x128xf32>
    %c0_10 = arith.constant 0 : index
    %c0_11 = arith.constant 0 : index
    %13 = vector.load %arg5[%c0_10, %c0_11] : memref<32x1xf32, #tpu.memory_space<vmem>>, vector<32x1xf32>
    %14 = vector.broadcast %13 : vector<32x1xf32> to vector<32x128xf32>
    %15 = arith.addf %12, %14 : vector<32x128xf32>
    %cst_12 = arith.constant 0.000000e+00 : f32
    %16 = vector.broadcast %cst_12 : f32 to vector<32x128xf32>
    %17 = arith.cmpf oge, %15, %16 : vector<32x128xf32>
    %cst_13 = arith.constant 5.000000e-01 : f32
    %18 = vector.broadcast %cst_13 : f32 to vector<32x128xf32>
    %19 = arith.mulf %18, %15 : vector<32x128xf32>
    %20 = arith.select %17, %15, %19 : vector<32x128xi1>, vector<32x128xf32>
    %c0_14 = arith.constant 0 : index
    %c0_15 = arith.constant 0 : index
    %21 = vector.load %arg6[%c0_14, %c0_15] : memref<8x32xf32, #tpu.memory_space<vmem>>, vector<8x32xf32>
    %cst_16 = arith.constant dense<0.000000e+00> : vector<8x128xf32>
    %22 = tpu.matmul %21, %20, %cst_16 {dimension_numbers = #tpu.dot_dimension_numbers<[1], [0], [0], [1], [0, 0, 1, 1], [], []>} : vector<8x32xf32>, vector<32x128xf32>, vector<8x128xf32> -> vector<8x128xf32>
    %c0_17 = arith.constant 0 : index
    %c0_18 = arith.constant 0 : index
    %23 = vector.load %arg7[%c0_17, %c0_18] : memref<8x1xf32, #tpu.memory_space<vmem>>, vector<8x1xf32>
    %24 = vector.broadcast %23 : vector<8x1xf32> to vector<8x128xf32>
    %25 = arith.addf %22, %24 : vector<8x128xf32>
    %c0_19 = arith.constant 0 : index
    %c0_20 = arith.constant 0 : index
    %26 = vector.load %arg15[%c0_19, %c0_20] : memref<8x128xf32, #tpu.memory_space<vmem>>, vector<8x128xf32>
    tpu.vector_store %arg15[%c0_19, %c0_20], %25 {strides = array<i32>} : memref<8x128xf32, #tpu.memory_space<vmem>>, vector<8x128xf32>,
    %c0_21 = arith.constant 0 : index
    %c0_22 = arith.constant 0 : index
    %27 = vector.load %arg8[%c0_21, %c0_22] : memref<32x8xf32, #tpu.memory_space<vmem>>, vector<32x8xf32>
    %cst_23 = arith.constant dense<0.000000e+00> : vector<32x128xf32>
    %28 = tpu.matmul %27, %25, %cst_23 {dimension_numbers = #tpu.dot_dimension_numbers<[1], [0], [0], [1], [0, 0, 1, 1], [], []>} : vector<32x8xf32>, vector<8x128xf32>, vector<32x128xf32> -> vector<32x128xf32>
    %c0_24 = arith.constant 0 : index
    %c0_25 = arith.constant 0 : index
    %29 = vector.load %arg9[%c0_24, %c0_25] : memref<32x1xf32, #tpu.memory_space<vmem>>, vector<32x1xf32>
    %30 = vector.broadcast %29 : vector<32x1xf32> to vector<32x128xf32>
    %31 = arith.addf %28, %30 : vector<32x128xf32>
    %cst_26 = arith.constant 0.000000e+00 : f32
    %32 = vector.broadcast %cst_26 : f32 to vector<32x128xf32>
    %33 = arith.cmpf oge, %31, %32 : vector<32x128xf32>
    %cst_27 = arith.constant 5.000000e-01 : f32
    %34 = vector.broadcast %cst_27 : f32 to vector<32x128xf32>
    %35 = arith.mulf %34, %31 : vector<32x128xf32>
    %36 = arith.select %33, %31, %35 : vector<32x128xi1>, vector<32x128xf32>
    %c0_28 = arith.constant 0 : index
    %c0_29 = arith.constant 0 : index
    %37 = vector.load %arg10[%c0_28, %c0_29] : memref<32x32xf32, #tpu.memory_space<vmem>>, vector<32x32xf32>
    %cst_30 = arith.constant dense<0.000000e+00> : vector<32x128xf32>
    %38 = tpu.matmul %37, %36, %cst_30 {dimension_numbers = #tpu.dot_dimension_numbers<[1], [0], [0], [1], [0, 0, 1, 1], [], []>} : vector<32x32xf32>, vector<32x128xf32>, vector<32x128xf32> -> vector<32x128xf32>
    %c0_31 = arith.constant 0 : index
    %c0_32 = arith.constant 0 : index
    %39 = vector.load %arg11[%c0_31, %c0_32] : memref<32x1xf32, #tpu.memory_space<vmem>>, vector<32x1xf32>
    %40 = vector.broadcast %39 : vector<32x1xf32> to vector<32x128xf32>
    %41 = arith.addf %38, %40 : vector<32x128xf32>
    %cst_33 = arith.constant 0.000000e+00 : f32
    %42 = vector.broadcast %cst_33 : f32 to vector<32x128xf32>
    %43 = arith.cmpf oge, %41, %42 : vector<32x128xf32>
    %cst_34 = arith.constant 5.000000e-01 : f32
    %44 = vector.broadcast %cst_34 : f32 to vector<32x128xf32>
    %45 = arith.mulf %44, %41 : vector<32x128xf32>
    %46 = arith.select %43, %41, %45 : vector<32x128xi1>, vector<32x128xf32>
    %c0_35 = arith.constant 0 : index
    %c0_36 = arith.constant 0 : index
    %47 = vector.load %arg12[%c0_35, %c0_36] : memref<16x32xf32, #tpu.memory_space<vmem>>, vector<16x32xf32>
    %cst_37 = arith.constant dense<0.000000e+00> : vector<16x128xf32>
    %48 = tpu.matmul %47, %46, %cst_37 {dimension_numbers = #tpu.dot_dimension_numbers<[1], [0], [0], [1], [0, 0, 1, 1], [], []>} : vector<16x32xf32>, vector<32x128xf32>, vector<16x128xf32> -> vector<16x128xf32>
    %c0_38 = arith.constant 0 : index
    %c0_39 = arith.constant 0 : index
    %49 = vector.load %arg13[%c0_38, %c0_39] : memref<16x1xf32, #tpu.memory_space<vmem>>, vector<16x1xf32>
    %50 = vector.broadcast %49 : vector<16x1xf32> to vector<16x128xf32>
    %51 = arith.addf %48, %50 : vector<16x128xf32>
    %c0_40 = arith.constant 0 : index
    %c0_41 = arith.constant 0 : index
    %52 = vector.load %arg14[%c0_40, %c0_41] : memref<16x128xf32, #tpu.memory_space<vmem>>, vector<16x128xf32>
    tpu.vector_store %arg14[%c0_40, %c0_41], %51 {strides = array<i32>} : memref<16x128xf32, #tpu.memory_space<vmem>>, vector<16x128xf32>,
    return
  }
  func.func @transform_0(%arg0: i32) -> (i32, i32) {
    %c0_i32 = arith.constant 0 : i32
    %c0_i32_0 = arith.constant 0 : i32
    return %arg0, %c0_i32 : i32, i32
  }
  func.func @transform_1(%arg0: i32) -> (i32, i32) {
    %c0_i32 = arith.constant 0 : i32
    %c0_i32_0 = arith.constant 0 : i32
    %c0_i32_1 = arith.constant 0 : i32
    return %c0_i32, %c0_i32_0 : i32, i32
  }
  func.func @transform_2(%arg0: i32) -> (i32, i32) {
    %c0_i32 = arith.constant 0 : i32
    %c0_i32_0 = arith.constant 0 : i32
    %c0_i32_1 = arith.constant 0 : i32
    return %c0_i32, %c0_i32_0 : i32, i32
  }
  func.func @transform_3(%arg0: i32) -> (i32, i32) {
    %c0_i32 = arith.constant 0 : i32
    %c0_i32_0 = arith.constant 0 : i32
    %c0_i32_1 = arith.constant 0 : i32
    return %c0_i32, %c0_i32_0 : i32, i32
  }
  func.func @transform_4(%arg0: i32) -> (i32, i32) {
    %c0_i32 = arith.constant 0 : i32
    %c0_i32_0 = arith.constant 0 : i32
    %c0_i32_1 = arith.constant 0 : i32
    return %c0_i32, %c0_i32_0 : i32, i32
  }
  func.func @transform_5(%arg0: i32) -> (i32, i32) {
    %c0_i32 = arith.constant 0 : i32
    %c0_i32_0 = arith.constant 0 : i32
    %c0_i32_1 = arith.constant 0 : i32
    return %c0_i32, %c0_i32_0 : i32, i32
  }
  func.func @transform_6(%arg0: i32) -> (i32, i32) {
    %c0_i32 = arith.constant 0 : i32
    %c0_i32_0 = arith.constant 0 : i32
    %c0_i32_1 = arith.constant 0 : i32
    return %c0_i32, %c0_i32_0 : i32, i32
  }
  func.func @transform_7(%arg0: i32) -> (i32, i32) {
    %c0_i32 = arith.constant 0 : i32
    %c0_i32_0 = arith.constant 0 : i32
    %c0_i32_1 = arith.constant 0 : i32
    return %c0_i32, %c0_i32_0 : i32, i32
  }
  func.func @transform_8(%arg0: i32) -> (i32, i32) {
    %c0_i32 = arith.constant 0 : i32
    %c0_i32_0 = arith.constant 0 : i32
    %c0_i32_1 = arith.constant 0 : i32
    return %c0_i32, %c0_i32_0 : i32, i32
  }
  func.func @transform_9(%arg0: i32) -> (i32, i32) {
    %c0_i32 = arith.constant 0 : i32
    %c0_i32_0 = arith.constant 0 : i32
    %c0_i32_1 = arith.constant 0 : i32
    return %c0_i32, %c0_i32_0 : i32, i32
  }
  func.func @transform_10(%arg0: i32) -> (i32, i32) {
    %c0_i32 = arith.constant 0 : i32
    %c0_i32_0 = arith.constant 0 : i32
    %c0_i32_1 = arith.constant 0 : i32
    return %c0_i32, %c0_i32_0 : i32, i32
  }
  func.func @transform_11(%arg0: i32) -> (i32, i32) {
    %c0_i32 = arith.constant 0 : i32
    %c0_i32_0 = arith.constant 0 : i32
    %c0_i32_1 = arith.constant 0 : i32
    return %c0_i32, %c0_i32_0 : i32, i32
  }
  func.func @transform_12(%arg0: i32) -> (i32, i32) {
    %c0_i32 = arith.constant 0 : i32
    %c0_i32_0 = arith.constant 0 : i32
    %c0_i32_1 = arith.constant 0 : i32
    return %c0_i32, %c0_i32_0 : i32, i32
  }
  func.func @transform_13(%arg0: i32) -> (i32, i32) {
    %c0_i32 = arith.constant 0 : i32
    %c0_i32_0 = arith.constant 0 : i32
    return %c0_i32, %arg0 : i32, i32
  }
  func.func @transform_14(%arg0: i32) -> (i32, i32) {
    %c0_i32 = arith.constant 0 : i32
    %c0_i32_0 = arith.constant 0 : i32
    return %c0_i32, %arg0 : i32, i32
  }
}

</mosaic_0001>

<llo_original>
// kernel: ae_forward.1
$region0: #{ae_forward.1}
  #allocation0 [shape = 'u32[]', space=smem, size = 0x4, offset = 0x4, fixed_abs, tag = 'smem constant byte address 0x4 - core index']
  #allocation1 [shape = 'u32[144,128]{1,0:T(1,128)}', space=vmem, size = 0x12000, scoped, tag = 'internal scratch']
  %s0 = inlined_call_operand.vmem [shape: f32[128,16], index: 0, kind: input, shape index: {}]
  %s1 = inlined_call_operand.vmem [shape: f32[32,16], index: 1, kind: input, shape index: {}]
  %s2 = inlined_call_operand.vmem [shape: f32[32,1], index: 2, kind: input, shape index: {}]
  %s3 = inlined_call_operand.vmem [shape: f32[32,32], index: 3, kind: input, shape index: {}]
  %s4 = inlined_call_operand.vmem [shape: f32[32,1], index: 4, kind: input, shape index: {}]
  %s5 = inlined_call_operand.vmem [shape: f32[8,32], index: 5, kind: input, shape index: {}]
  %s6 = inlined_call_operand.vmem [shape: f32[8,1], index: 6, kind: input, shape index: {}]
  %s7 = inlined_call_operand.vmem [shape: f32[32,8], index: 7, kind: input, shape index: {}]
  %s8 = inlined_call_operand.vmem [shape: f32[32,1], index: 8, kind: input, shape index: {}]
  %s9 = inlined_call_operand.vmem [shape: f32[32,32], index: 9, kind: input, shape index: {}]
  %s10 = inlined_call_operand.vmem [shape: f32[32,1], index: 10, kind: input, shape index: {}]
  %s11 = inlined_call_operand.vmem [shape: f32[16,32], index: 11, kind: input, shape index: {}]
  %s12 = inlined_call_operand.vmem [shape: f32[16,1], index: 12, kind: input, shape index: {}]
  %s13 = inlined_call_operand.vmem [shape: f32[16,128], index: 13, kind: output, shape index: {0}]
  %s14 = inlined_call_operand.vmem [shape: f32[8,128], index: 14, kind: output, shape index: {1}]
  %15 = xla_tuple %s13, %s14
  %s16 = sld [smem:[#allocation0]]
  $region70: #{ae_forward.1} parent=0
    _
  %s18 = ssub.s32 1, %s16
  %s19 = scalar_select 0, %s18, %s16
  // Predicated region
  $region2: #{ae_forward.1} parent=0 // pred_check
    _
  $region3: #{ae_forward.1} parent=0 // pred_check_branch
    %21 = sbr.rel (0) target = $region5
  $region4: #{ae_forward.1} parent=0 // pred_region
    _
  $region5: #{ae_forward.1} parent=0 // pred_fallthru
    _
  // Predicated region
  $region6: #{ae_forward.1} parent=0 // pred_check
    _
  $region7: #{ae_forward.1} parent=0 // pred_check_branch
    %23 = sbr.rel (0) target = $region9
  $region8: #{ae_forward.1} parent=0 // pred_region
    _
  $region9: #{ae_forward.1} parent=0 // pred_fallthru
    _
  // Predicated region
  $region10: #{ae_forward.1} parent=0 // pred_check
    _
  $region11: #{ae_forward.1} parent=0 // pred_check_branch
    %25 = sbr.rel (0) target = $region13
  $region12: #{ae_forward.1} parent=0 // pred_region
    _
  $region13: #{ae_forward.1} parent=0 // pred_fallthru
    _
  // Predicated region
  $region14: #{ae_forward.1} parent=0 // pred_check
    _
  $region15: #{ae_forward.1} parent=0 // pred_check_branch
    %27 = sbr.rel (0) target = $region17
  $region16: #{ae_forward.1} parent=0 // pred_region
    _
  $region17: #{ae_forward.1} parent=0 // pred_fallthru
    _
  // Predicated region
  $region18: #{ae_forward.1} parent=0 // pred_check
    _
  $region19: #{ae_forward.1} parent=0 // pred_check_branch
    %29 = sbr.rel (0) target = $region21
  $region20: #{ae_forward.1} parent=0 // pred_region
    _
  $region21: #{ae_forward.1} parent=0 // pred_fallthru
    _
  // Predicated region
  $region22: #{ae_forward.1} parent=0 // pred_check
    _
  $region23: #{ae_forward.1} parent=0 // pred_check_branch
    %31 = sbr.rel (0) target = $region25
  $region24: #{ae_forward.1} parent=0 // pred_region
    _
  $region25: #{ae_forward.1} parent=0 // pred_fallthru
    _
  // Predicated region
  $region26: #{ae_forward.1} parent=0 // pred_check
    _
  $region27: #{ae_forward.1} parent=0 // pred_check_branch
    %33 = sbr.rel (0) target = $region29
  $region28: #{ae_forward.1} parent=0 // pred_region
    _
  $region29: #{ae_forward.1} parent=0 // pred_fallthru
    _
  // Predicated region
  $region30: #{ae_forward.1} parent=0 // pred_check
    _
  $region31: #{ae_forward.1} parent=0 // pred_check_branch
    %35 = sbr.rel (0) target = $region33
  $region32: #{ae_forward.1} parent=0 // pred_region
    _
  $region33: #{ae_forward.1} parent=0 // pred_fallthru
    _
  // Predicated region
  $region34: #{ae_forward.1} parent=0 // pred_check
    _
  $region35: #{ae_forward.1} parent=0 // pred_check_branch
    %37 = sbr.rel (0) target = $region37
  $region36: #{ae_forward.1} parent=0 // pred_region
    _
  $region37: #{ae_forward.1} parent=0 // pred_fallthru
    _
  // Predicated region
  $region38: #{ae_forward.1} parent=0 // pred_check
    _
  $region39: #{ae_forward.1} parent=0 // pred_check_branch
    %39 = sbr.rel (0) target = $region41
  $region40: #{ae_forward.1} parent=0 // pred_region
    _
  $region41: #{ae_forward.1} parent=0 // pred_fallthru
    _
  // Predicated region
  $region42: #{ae_forward.1} parent=0 // pred_check
    _
  $region43: #{ae_forward.1} parent=0 // pred_check_branch
    %41 = sbr.rel (0) target = $region45
  $region44: #{ae_forward.1} parent=0 // pred_region
    _
  $region45: #{ae_forward.1} parent=0 // pred_fallthru
    _
  // Predicated region
  $region46: #{ae_forward.1} parent=0 // pred_check
    _
  $region47: #{ae_forward.1} parent=0 // pred_check_branch
    %43 = sbr.rel (0) target = $region49
  $region48: #{ae_forward.1} parent=0 // pred_region
    _
  $region49: #{ae_forward.1} parent=0 // pred_fallthru
    _
  // Predicated region
  $region50: #{ae_forward.1} parent=0 // pred_check
    _
  $region51: #{ae_forward.1} parent=0 // pred_check_branch
    %45 = sbr.rel (0) target = $region53
  $region52: #{ae_forward.1} parent=0 // pred_region
    _
  $region53: #{ae_forward.1} parent=0 // pred_fallthru
    _
  %v46 = vld [vmem:[%s0] sm:$0xff]
  %v47 = vld [vmem:[%s0 + $0x8] sm:$0xff]
  %v48 = vld [vmem:[%s0 + $0x10] sm:$0xff]
  %v49 = vld [vmem:[%s0 + $0x18] sm:$0xff]
  %v50 = vld [vmem:[%s0 + $0x20] sm:$0xff]
  %v51 = vld [vmem:[%s0 + $0x28] sm:$0xff]
  %v52 = vld [vmem:[%s0 + $0x30] sm:$0xff]
  %v53 = vld [vmem:[%s0 + $0x38] sm:$0xff]
  %v54 = vld [vmem:[%s0 + $0x40] sm:$0xff]
  %v55 = vld [vmem:[%s0 + $0x48] sm:$0xff]
  %v56 = vld [vmem:[%s0 + $0x50] sm:$0xff]
  %v57 = vld [vmem:[%s0 + $0x58] sm:$0xff]
  %v58 = vld [vmem:[%s0 + $0x60] sm:$0xff]
  %v59 = vld [vmem:[%s0 + $0x68] sm:$0xff]
  %v60 = vld [vmem:[%s0 + $0x70] sm:$0xff]
  %v61 = vld [vmem:[%s0 + $0x78] sm:$0xff]
  %v62 = vld [vmem:[%s1] sm:$0xff]
  %v63 = vld [vmem:[%s1 + $0x8] sm:$0xff]
  %v64 = vld [vmem:[%s1 + $0x10] sm:$0xff]
  %v65 = vld [vmem:[%s1 + $0x18] sm:$0xff]
  %v66 = vld [vmem:[%s2] sm:$0xff]
  %v67 = vld [vmem:[%s2 + $0x8] sm:$0xff]
  %v68 = vld [vmem:[%s2 + $0x10] sm:$0xff]
  %v69 = vld [vmem:[%s2 + $0x18] sm:$0xff]
  %71 = vset.pattern.permute.xlu0 0
  %72 = vperm.xlu0 %71, %v66
  %v73 = vpop.permute.xlu0 %72
  %76 = vset.pattern.permute.xlu0 0
  %77 = vperm.xlu0 %76, %v67
  %v78 = vpop.permute.xlu0 %77
  %81 = vset.pattern.permute.xlu0 0
  %82 = vperm.xlu0 %81, %v68
  %v83 = vpop.permute.xlu0 %82
  %86 = vset.pattern.permute.xlu0 0
  %87 = vperm.xlu0 %86, %v69
  %v88 = vpop.permute.xlu0 %87
  %vm90 = vcmask 130048
  %v92 = vsel %vm90, %v62, 0
  %v95 = vsel %vm90, %v63, 0
  %v98 = vsel %vm90, %v64, 0
  %v101 = vsel %vm90, %v65, 0
  %v104 = vsel %vm90, %v46, 0
  %v107 = vsel %vm90, %v47, 0
  %v110 = vsel %vm90, %v48, 0
  %v113 = vsel %vm90, %v49, 0
  %v116 = vsel %vm90, %v50, 0
  %v119 = vsel %vm90, %v51, 0
  %v122 = vsel %vm90, %v52, 0
  %v125 = vsel %vm90, %v53, 0
  %v128 = vsel %vm90, %v54, 0
  %v131 = vsel %vm90, %v55, 0
  %v134 = vsel %vm90, %v56, 0
  %v137 = vsel %vm90, %v57, 0
  %v140 = vsel %vm90, %v58, 0
  %v143 = vsel %vm90, %v59, 0
  %v146 = vsel %vm90, %v60, 0
  %v149 = vsel %vm90, %v61, 0
  %151 = vmatprep.subr.mxu0 0.0
  %152 = vmatpush1.xpose.msra.mxu0 %v104
  %153 = vmatprep.subr.mxu0 0.0
  %154 = vmatpush1.xpose.msra.mxu0 %v107
  %155 = vmatprep.subr.mxu0 0.0
  %156 = vmatpush1.xpose.msra.mxu0 %v110
  %157 = vmatprep.subr.mxu0 0.0
  %158 = vmatpush1.xpose.msra.mxu0 %v113
  %159 = vmatprep.subr.mxu0 0.0
  %160 = vmatpush1.xpose.msra.mxu0 %v116
  %161 = vmatprep.subr.mxu0 0.0
  %162 = vmatpush1.xpose.msra.mxu0 %v119
  %163 = vmatprep.subr.mxu0 0.0
  %164 = vmatpush1.xpose.msra.mxu0 %v122
  %165 = vmatprep.subr.mxu0 0.0
  %166 = vmatpush1.xpose.msra.mxu0 %v125
  %167 = vmatprep.subr.mxu0 0.0
  %168 = vmatpush1.xpose.msra.mxu0 %v128
  %169 = vmatprep.subr.mxu0 0.0
  %170 = vmatpush1.xpose.msra.mxu0 %v131
  %171 = vmatprep.subr.mxu0 0.0
  %172 = vmatpush1.xpose.msra.mxu0 %v134
  %173 = vmatprep.subr.mxu0 0.0
  %174 = vmatpush1.xpose.msra.mxu0 %v137
  %175 = vmatprep.subr.mxu0 0.0
  %176 = vmatpush1.xpose.msra.mxu0 %v140
  %177 = vmatprep.subr.mxu0 0.0
  %178 = vmatpush1.xpose.msra.mxu0 %v143
  %179 = vmatprep.subr.mxu0 0.0
  %180 = vmatpush1.xpose.msra.mxu0 %v146
  %181 = vmatprep.subr.mxu0 0.0
  %182 = vmatpush1.xpose.msra.mxu0 %v149
  %183 = vmatprep.subr.mxu0 0.0
  %184 = vmatpush1.xpose.msra.mxu0 0.0
  %185 = vmatprep.subr.mxu0 0.0
  %186 = vmatpush1.xpose.msra.mxu0 0.0
  %187 = vmatprep.subr.mxu0 0.0
  %188 = vmatpush1.xpose.msra.mxu0 0.0
  %189 = vmatprep.subr.mxu0 0.0
  %190 = vmatpush1.xpose.msra.mxu0 0.0
  %191 = vmatprep.subr.mxu0 0.0
  %192 = vmatpush1.xpose.msra.mxu0 0.0
  %193 = vmatprep.subr.mxu0 0.0
  %194 = vmatpush1.xpose.msra.mxu0 0.0
  %195 = vmatprep.subr.mxu0 0.0
  %196 = vmatpush1.xpose.msra.mxu0 0.0
  %197 = vmatprep.subr.mxu0 0.0
  %198 = vmatpush1.xpose.msra.mxu0 0.0
  %199 = vmatprep.subr.mxu0 0.0
  %200 = vmatpush1.xpose.msra.mxu0 0.0
  %201 = vmatprep.subr.mxu0 0.0
  %202 = vmatpush1.xpose.msra.mxu0 0.0
  %203 = vmatprep.subr.mxu0 0.0
  %204 = vmatpush1.xpose.msra.mxu0 0.0
  %205 = vmatprep.subr.mxu0 0.0
  %206 = vmatpush1.xpose.msra.mxu0 0.0
  %207 = vmatprep.subr.mxu0 0.0
  %208 = vmatpush1.xpose.msra.mxu0 0.0
  %209 = vmatprep.subr.mxu0 0.0
  %210 = vmatpush1.xpose.msra.mxu0 0.0
  %211 = vmatprep.subr.mxu0 0.0
  %212 = vmatpush1.xpose.msra.mxu0 0.0
  %213 = vmatprep.subr.mxu0 0.0
  %214 = vmatpush1.xpose.msra.mxu0 0.0
  %215 = vmatprep.mubr.f32.mxu0 0.0
  %216 = vmatmul.mubr.f32.gmra.mrb[0].mxu0 %v92
  %v217 = vpop.f32.mrb[0].mxu0
  %v218 = vadd.f32 %v73, %v217
  %v219 = vpop.f32.mrb[0].mxu0
  %220 = vmatprep.mubr.f32.mxu0 0.0
  %221 = vmatmul.mubr.f32.gmra.mrb[0].mxu0 %v95
  %v222 = vpop.f32.mrb[0].mxu0
  %v223 = vadd.f32 %v78, %v222
  %v224 = vpop.f32.mrb[0].mxu0
  %225 = vmatprep.mubr.f32.mxu0 0.0
  %226 = vmatmul.mubr.f32.gmra.mrb[0].mxu0 %v98
  %v227 = vpop.f32.mrb[0].mxu0
  %v228 = vadd.f32 %v83, %v227
  %v229 = vpop.f32.mrb[0].mxu0
  %230 = vmatprep.mubr.f32.mxu0 0.0
  %231 = vmatmul.mubr.f32.gmra.mrb[0].mxu0 %v101
  %v232 = vpop.f32.mrb[0].mxu0
  %v233 = vadd.f32 %v88, %v232
  %v234 = vpop.f32.mrb[0].mxu0
  %235 = vdwg.mxu0
  %vm236 = vcmp.ge.f32.partialorder %v218, 0.0
  %vm237 = vcmp.ge.f32.partialorder %v223, 0.0
  %vm238 = vcmp.ge.f32.partialorder %v228, 0.0
  %vm239 = vcmp.ge.f32.partialorder %v233, 0.0
  %v240 = vmul.f32 %v218, 0.5
  %v241 = vmul.f32 %v223, 0.5
  %v242 = vmul.f32 %v228, 0.5
  %v243 = vmul.f32 %v233, 0.5
  %v244 = vsel %vm236, %v218, %v240
  %v245 = vsel %vm237, %v223, %v241
  %v246 = vsel %vm238, %v228, %v242
  %v247 = vsel %vm239, %v233, %v243
  %v248 = vld [vmem:[%s3] sm:$0xff]
  %v249 = vld [vmem:[%s3 + $0x8] sm:$0xff]
  %v250 = vld [vmem:[%s3 + $0x10] sm:$0xff]
  %v251 = vld [vmem:[%s3 + $0x18] sm:$0xff]
  %v252 = vld [vmem:[%s4] sm:$0xff]
  %v253 = vld [vmem:[%s4 + $0x8] sm:$0xff]
  %v254 = vld [vmem:[%s4 + $0x10] sm:$0xff]
  %v255 = vld [vmem:[%s4 + $0x18] sm:$0xff]
  %257 = vset.pattern.permute.xlu0 0
  %258 = vperm.xlu0 %257, %v252
  %v259 = vpop.permute.xlu0 %258
  %262 = vset.pattern.permute.xlu0 0
  %263 = vperm.xlu0 %262, %v253
  %v264 = vpop.permute.xlu0 %263
  %267 = vset.pattern.permute.xlu0 0
  %268 = vperm.xlu0 %267, %v254
  %v269 = vpop.permute.xlu0 %268
  %272 = vset.pattern.permute.xlu0 0
  %273 = vperm.xlu0 %272, %v255
  %v274 = vpop.permute.xlu0 %273
  %vm276 = vcmask 261120
  %v278 = vsel %vm276, %v248, 0
  %v281 = vsel %vm276, %v249, 0
  %v284 = vsel %vm276, %v250, 0
  %v287 = vsel %vm276, %v251, 0
  %289 = vmatprep.subr.mxu0 0.0
  %290 = vmatpush1.msra.mxu0 %v244
  %291 = vmatprep.subr.mxu0 0.0
  %292 = vmatpush1.msra.mxu0 %v245
  %293 = vmatprep.subr.mxu0 0.0
  %294 = vmatpush1.msra.mxu0 %v246
  %295 = vmatprep.subr.mxu0 0.0
  %296 = vmatpush1.msra.mxu0 %v247
  %297 = vmatprep.subr.mxu0 0.0
  %298 = vmatpush1.msra.mxu0 0.0
  %299 = vmatprep.subr.mxu0 0.0
  %300 = vmatpush1.msra.mxu0 0.0
  %301 = vmatprep.subr.mxu0 0.0
  %302 = vmatpush1.msra.mxu0 0.0
  %303 = vmatprep.subr.mxu0 0.0
  %304 = vmatpush1.msra.mxu0 0.0
  %305 = vmatprep.subr.mxu0 0.0
  %306 = vmatpush1.msra.mxu0 0.0
  %307 = vmatprep.subr.mxu0 0.0
  %308 = vmatpush1.msra.mxu0 0.0
  %309 = vmatprep.subr.mxu0 0.0
  %310 = vmatpush1.msra.mxu0 0.0
  %311 = vmatprep.subr.mxu0 0.0
  %312 = vmatpush1.msra.mxu0 0.0
  %313 = vmatprep.subr.mxu0 0.0
  %314 = vmatpush1.msra.mxu0 0.0
  %315 = vmatprep.subr.mxu0 0.0
  %316 = vmatpush1.msra.mxu0 0.0
  %317 = vmatprep.subr.mxu0 0.0
  %318 = vmatpush1.msra.mxu0 0.0
  %319 = vmatprep.subr.mxu0 0.0
  %320 = vmatpush1.msra.mxu0 0.0
  %321 = vmatprep.subr.mxu0 0.0
  %322 = vmatpush1.msra.mxu0 0.0
  %323 = vmatprep.subr.mxu0 0.0
  %324 = vmatpush1.msra.mxu0 0.0
  %325 = vmatprep.subr.mxu0 0.0
  %326 = vmatpush1.msra.mxu0 0.0
  %327 = vmatprep.subr.mxu0 0.0
  %328 = vmatpush1.msra.mxu0 0.0
  %329 = vmatprep.subr.mxu0 0.0
  %330 = vmatpush1.msra.mxu0 0.0
  %331 = vmatprep.subr.mxu0 0.0
  %332 = vmatpush1.msra.mxu0 0.0
  %333 = vmatprep.subr.mxu0 0.0
  %334 = vmatpush1.msra.mxu0 0.0
  %335 = vmatprep.subr.mxu0 0.0
  %336 = vmatpush1.msra.mxu0 0.0
  %337 = vmatprep.subr.mxu0 0.0
  %338 = vmatpush1.msra.mxu0 0.0
  %339 = vmatprep.subr.mxu0 0.0
  %340 = vmatpush1.msra.mxu0 0.0
  %341 = vmatprep.subr.mxu0 0.0
  %342 = vmatpush1.msra.mxu0 0.0
  %343 = vmatprep.subr.mxu0 0.0
  %344 = vmatpush1.msra.mxu0 0.0
  %345 = vmatprep.subr.mxu0 0.0
  %346 = vmatpush1.msra.mxu0 0.0
  %347 = vmatprep.subr.mxu0 0.0
  %348 = vmatpush1.msra.mxu0 0.0
  %349 = vmatprep.subr.mxu0 0.0
  %350 = vmatpush1.msra.mxu0 0.0
  %351 = vmatprep.subr.mxu0 0.0
  %352 = vmatpush1.msra.mxu0 0.0
  %353 = vmatprep.mubr.f32.mxu0 0.0
  %354 = vmatmul.mubr.f32.gmra.mrb[0].mxu0 %v278
  %v355 = vpop.f32.mrb[0].mxu0
  %v356 = vadd.f32 %v259, %v355
  %v357 = vpop.f32.mrb[0].mxu0
  %358 = vmatprep.mubr.f32.mxu0 0.0
  %359 = vmatmul.mubr.f32.gmra.mrb[0].mxu0 %v281
  %v360 = vpop.f32.mrb[0].mxu0
  %v361 = vadd.f32 %v264, %v360
  %v362 = vpop.f32.mrb[0].mxu0
  %363 = vmatprep.mubr.f32.mxu0 0.0
  %364 = vmatmul.mubr.f32.gmra.mrb[0].mxu0 %v284
  %v365 = vpop.f32.mrb[0].mxu0
  %v366 = vadd.f32 %v269, %v365
  %v367 = vpop.f32.mrb[0].mxu0
  %368 = vmatprep.mubr.f32.mxu0 0.0
  %369 = vmatmul.mubr.f32.gmra.mrb[0].mxu0 %v287
  %v370 = vpop.f32.mrb[0].mxu0
  %v371 = vadd.f32 %v274, %v370
  %v372 = vpop.f32.mrb[0].mxu0
  %373 = vdwg.mxu0
  %vm374 = vcmp.ge.f32.partialorder %v356, 0.0
  %vm375 = vcmp.ge.f32.partialorder %v361, 0.0
  %vm376 = vcmp.ge.f32.partialorder %v366, 0.0
  %vm377 = vcmp.ge.f32.partialorder %v371, 0.0
  %v378 = vmul.f32 %v356, 0.5
  %v379 = vmul.f32 %v361, 0.5
  %v380 = vmul.f32 %v366, 0.5
  %v381 = vmul.f32 %v371, 0.5
  %v382 = vsel %vm374, %v356, %v378
  %v383 = vsel %vm375, %v361, %v379
  %v384 = vsel %vm376, %v366, %v380
  %v385 = vsel %vm377, %v371, %v381
  %v386 = vld [vmem:[%s5] sm:$0xff]
  %v387 = vld [vmem:[%s6] sm:$0xff]
  %389 = vset.pattern.permute.xlu0 0
  %390 = vperm.xlu0 %389, %v387
  %v391 = vpop.permute.xlu0 %390
  %v394 = vsel %vm276, %v386, 0
  %396 = vmatprep.subr.mxu0 0.0
  %397 = vmatpush1.msra.mxu0 %v382
  %398 = vmatprep.subr.mxu0 0.0
  %399 = vmatpush1.msra.mxu0 %v383
  %400 = vmatprep.subr.mxu0 0.0
  %401 = vmatpush1.msra.mxu0 %v384
  %402 = vmatprep.subr.mxu0 0.0
  %403 = vmatpush1.msra.mxu0 %v385
  %404 = vmatprep.subr.mxu0 0.0
  %405 = vmatpush1.msra.mxu0 0.0
  %406 = vmatprep.subr.mxu0 0.0
  %407 = vmatpush1.msra.mxu0 0.0
  %408 = vmatprep.subr.mxu0 0.0
  %409 = vmatpush1.msra.mxu0 0.0
  %410 = vmatprep.subr.mxu0 0.0
  %411 = vmatpush1.msra.mxu0 0.0
  %412 = vmatprep.subr.mxu0 0.0
  %413 = vmatpush1.msra.mxu0 0.0
  %414 = vmatprep.subr.mxu0 0.0
  %415 = vmatpush1.msra.mxu0 0.0
  %416 = vmatprep.subr.mxu0 0.0
  %417 = vmatpush1.msra.mxu0 0.0
  %418 = vmatprep.subr.mxu0 0.0
  %419 = vmatpush1.msra.mxu0 0.0
  %420 = vmatprep.subr.mxu0 0.0
  %421 = vmatpush1.msra.mxu0 0.0
  %422 = vmatprep.subr.mxu0 0.0
  %423 = vmatpush1.msra.mxu0 0.0
  %424 = vmatprep.subr.mxu0 0.0
  %425 = vmatpush1.msra.mxu0 0.0
  %426 = vmatprep.subr.mxu0 0.0
  %427 = vmatpush1.msra.mxu0 0.0
  %428 = vmatprep.subr.mxu0 0.0
  %429 = vmatpush1.msra.mxu0 0.0
  %430 = vmatprep.subr.mxu0 0.0
  %431 = vmatpush1.msra.mxu0 0.0
  %432 = vmatprep.subr.mxu0 0.0
  %433 = vmatpush1.msra.mxu0 0.0
  %434 = vmatprep.subr.mxu0 0.0
  %435 = vmatpush1.msra.mxu0 0.0
  %436 = vmatprep.subr.mxu0 0.0
  %437 = vmatpush1.msra.mxu0 0.0
  %438 = vmatprep.subr.mxu0 0.0
  %439 = vmatpush1.msra.mxu0 0.0
  %440 = vmatprep.subr.mxu0 0.0
  %441 = vmatpush1.msra.mxu0 0.0
  %442 = vmatprep.subr.mxu0 0.0
  %443 = vmatpush1.msra.mxu0 0.0
  %444 = vmatprep.subr.mxu0 0.0
  %445 = vmatpush1.msra.mxu0 0.0
  %446 = vmatprep.subr.mxu0 0.0
  %447 = vmatpush1.msra.mxu0 0.0
  %448 = vmatprep.subr.mxu0 0.0
  %449 = vmatpush1.msra.mxu0 0.0
  %450 = vmatprep.subr.mxu0 0.0
  %451 = vmatpush1.msra.mxu0 0.0
  %452 = vmatprep.subr.mxu0 0.0
  %453 = vmatpush1.msra.mxu0 0.0
  %454 = vmatprep.subr.mxu0 0.0
  %455 = vmatpush1.msra.mxu0 0.0
  %456 = vmatprep.subr.mxu0 0.0
  %457 = vmatpush1.msra.mxu0 0.0
  %458 = vmatprep.subr.mxu0 0.0
  %459 = vmatpush1.msra.mxu0 0.0
  %460 = vmatprep.mubr.f32.mxu0 0.0
  %461 = vmatmul.mubr.f32.gmra.mrb[0].mxu0 %v394
  %v462 = vpop.f32.mrb[0].mxu0
  %v463 = vadd.f32 %v391, %v462
  %v464 = vpop.f32.mrb[0].mxu0
  %465 = vdwg.mxu0
  %466 = vst [vmem:[%s14] sm:$0xff] %v463
  %v467 = vld [vmem:[%s7] sm:$0xff]
  %v468 = vld [vmem:[%s7 + $0x8] sm:$0xff]
  %v469 = vld [vmem:[%s7 + $0x10] sm:$0xff]
  %v470 = vld [vmem:[%s7 + $0x18] sm:$0xff]
  %v471 = vld [vmem:[%s8] sm:$0xff]
  %v472 = vld [vmem:[%s8 + $0x8] sm:$0xff]
  %v473 = vld [vmem:[%s8 + $0x10] sm:$0xff]
  %v474 = vld [vmem:[%s8 + $0x18] sm:$0xff]
  %476 = vset.pattern.permute.xlu0 0
  %477 = vperm.xlu0 %476, %v471
  %v478 = vpop.permute.xlu0 %477
  %481 = vset.pattern.permute.xlu0 0
  %482 = vperm.xlu0 %481, %v472
  %v483 = vpop.permute.xlu0 %482
  %486 = vset.pattern.permute.xlu0 0
  %487 = vperm.xlu0 %486, %v473
  %v488 = vpop.permute.xlu0 %487
  %491 = vset.pattern.permute.xlu0 0
  %492 = vperm.xlu0 %491, %v474
  %v493 = vpop.permute.xlu0 %492
  %vm495 = vcmask 64512
  %v497 = vsel %vm495, %v467, 0
  %v500 = vsel %vm495, %v468, 0
  %v503 = vsel %vm495, %v469, 0
  %v506 = vsel %vm495, %v470, 0
  %508 = vmatprep.subr.mxu0 0.0
  %509 = vmatpush1.msra.mxu0 %v463
  %510 = vmatprep.subr.mxu0 0.0
  %511 = vmatpush1.msra.mxu0 0.0
  %512 = vmatprep.subr.mxu0 0.0
  %513 = vmatpush1.msra.mxu0 0.0
  %514 = vmatprep.subr.mxu0 0.0
  %515 = vmatpush1.msra.mxu0 0.0
  %516 = vmatprep.subr.mxu0 0.0
  %517 = vmatpush1.msra.mxu0 0.0
  %518 = vmatprep.subr.mxu0 0.0
  %519 = vmatpush1.msra.mxu0 0.0
  %520 = vmatprep.subr.mxu0 0.0
  %521 = vmatpush1.msra.mxu0 0.0
  %522 = vmatprep.subr.mxu0 0.0
  %523 = vmatpush1.msra.mxu0 0.0
  %524 = vmatprep.subr.mxu0 0.0
  %525 = vmatpush1.msra.mxu0 0.0
  %526 = vmatprep.subr.mxu0 0.0
  %527 = vmatpush1.msra.mxu0 0.0
  %528 = vmatprep.subr.mxu0 0.0
  %529 = vmatpush1.msra.mxu0 0.0
  %530 = vmatprep.subr.mxu0 0.0
  %531 = vmatpush1.msra.mxu0 0.0
  %532 = vmatprep.subr.mxu0 0.0
  %533 = vmatpush1.msra.mxu0 0.0
  %534 = vmatprep.subr.mxu0 0.0
  %535 = vmatpush1.msra.mxu0 0.0
  %536 = vmatprep.subr.mxu0 0.0
  %537 = vmatpush1.msra.mxu0 0.0
  %538 = vmatprep.subr.mxu0 0.0
  %539 = vmatpush1.msra.mxu0 0.0
  %540 = vmatprep.subr.mxu0 0.0
  %541 = vmatpush1.msra.mxu0 0.0
  %542 = vmatprep.subr.mxu0 0.0
  %543 = vmatpush1.msra.mxu0 0.0
  %544 = vmatprep.subr.mxu0 0.0
  %545 = vmatpush1.msra.mxu0 0.0
  %546 = vmatprep.subr.mxu0 0.0
  %547 = vmatpush1.msra.mxu0 0.0
  %548 = vmatprep.subr.mxu0 0.0
  %549 = vmatpush1.msra.mxu0 0.0
  %550 = vmatprep.subr.mxu0 0.0
  %551 = vmatpush1.msra.mxu0 0.0
  %552 = vmatprep.subr.mxu0 0.0
  %553 = vmatpush1.msra.mxu0 0.0
  %554 = vmatprep.subr.mxu0 0.0
  %555 = vmatpush1.msra.mxu0 0.0
  %556 = vmatprep.subr.mxu0 0.0
  %557 = vmatpush1.msra.mxu0 0.0
  %558 = vmatprep.subr.mxu0 0.0
  %559 = vmatpush1.msra.mxu0 0.0
  %560 = vmatprep.subr.mxu0 0.0
  %561 = vmatpush1.msra.mxu0 0.0
  %562 = vmatprep.subr.mxu0 0.0
  %563 = vmatpush1.msra.mxu0 0.0
  %564 = vmatprep.subr.mxu0 0.0
  %565 = vmatpush1.msra.mxu0 0.0
  %566 = vmatprep.subr.mxu0 0.0
  %567 = vmatpush1.msra.mxu0 0.0
  %568 = vmatprep.subr.mxu0 0.0
  %569 = vmatpush1.msra.mxu0 0.0
  %570 = vmatprep.subr.mxu0 0.0
  %571 = vmatpush1.msra.mxu0 0.0
  %572 = vmatprep.mubr.f32.mxu0 0.0
  %573 = vmatmul.mubr.f32.gmra.mrb[0].mxu0 %v497
  %v574 = vpop.f32.mrb[0].mxu0
  %v575 = vadd.f32 %v478, %v574
  %v576 = vpop.f32.mrb[0].mxu0
  %577 = vmatprep.mubr.f32.mxu0 0.0
  %578 = vmatmul.mubr.f32.gmra.mrb[0].mxu0 %v500
  %v579 = vpop.f32.mrb[0].mxu0
  %v580 = vadd.f32 %v483, %v579
  %v581 = vpop.f32.mrb[0].mxu0
  %582 = vmatprep.mubr.f32.mxu0 0.0
  %583 = vmatmul.mubr.f32.gmra.mrb[0].mxu0 %v503
  %v584 = vpop.f32.mrb[0].mxu0
  %v585 = vadd.f32 %v488, %v584
  %v586 = vpop.f32.mrb[0].mxu0
  %587 = vmatprep.mubr.f32.mxu0 0.0
  %588 = vmatmul.mubr.f32.gmra.mrb[0].mxu0 %v506
  %v589 = vpop.f32.mrb[0].mxu0
  %v590 = vadd.f32 %v493, %v589
  %v591 = vpop.f32.mrb[0].mxu0
  %592 = vdwg.mxu0
  %vm593 = vcmp.ge.f32.partialorder %v575, 0.0
  %vm594 = vcmp.ge.f32.partialorder %v580, 0.0
  %vm595 = vcmp.ge.f32.partialorder %v585, 0.0
  %vm596 = vcmp.ge.f32.partialorder %v590, 0.0
  %v597 = vmul.f32 %v575, 0.5
  %v598 = vmul.f32 %v580, 0.5
  %v599 = vmul.f32 %v585, 0.5
  %v600 = vmul.f32 %v590, 0.5
  %v601 = vsel %vm593, %v575, %v597
  %v602 = vsel %vm594, %v580, %v598
  %v603 = vsel %vm595, %v585, %v599
  %v604 = vsel %vm596, %v590, %v600
  %v605 = vld [vmem:[%s9] sm:$0xff]
  %v606 = vld [vmem:[%s9 + $0x8] sm:$0xff]
  %v607 = vld [vmem:[%s9 + $0x10] sm:$0xff]
  %v608 = vld [vmem:[%s9 + $0x18] sm:$0xff]
  %v609 = vld [vmem:[%s10] sm:$0xff]
  %v610 = vld [vmem:[%s10 + $0x8] sm:$0xff]
  %v611 = vld [vmem:[%s10 + $0x10] sm:$0xff]
  %v612 = vld [vmem:[%s10 + $0x18] sm:$0xff]
  %614 = vset.pattern.permute.xlu0 0
  %615 = vperm.xlu0 %614, %v609
  %v616 = vpop.permute.xlu0 %615
  %619 = vset.pattern.permute.xlu0 0
  %620 = vperm.xlu0 %619, %v610
  %v621 = vpop.permute.xlu0 %620
  %624 = vset.pattern.permute.xlu0 0
  %625 = vperm.xlu0 %624, %v611
  %v626 = vpop.permute.xlu0 %625
  %629 = vset.pattern.permute.xlu0 0
  %630 = vperm.xlu0 %629, %v612
  %v631 = vpop.permute.xlu0 %630
  %v634 = vsel %vm276, %v605, 0
  %v637 = vsel %vm276, %v606, 0
  %v640 = vsel %vm276, %v607, 0
  %v643 = vsel %vm276, %v608, 0
  %645 = vmatprep.subr.mxu0 0.0
  %646 = vmatpush1.msra.mxu0 %v601
  %647 = vmatprep.subr.mxu0 0.0
  %648 = vmatpush1.msra.mxu0 %v602
  %649 = vmatprep.subr.mxu0 0.0
  %650 = vmatpush1.msra.mxu0 %v603
  %651 = vmatprep.subr.mxu0 0.0
  %652 = vmatpush1.msra.mxu0 %v604
  %653 = vmatprep.subr.mxu0 0.0
  %654 = vmatpush1.msra.mxu0 0.0
  %655 = vmatprep.subr.mxu0 0.0
  %656 = vmatpush1.msra.mxu0 0.0
  %657 = vmatprep.subr.mxu0 0.0
  %658 = vmatpush1.msra.mxu0 0.0
  %659 = vmatprep.subr.mxu0 0.0
  %660 = vmatpush1.msra.mxu0 0.0
  %661 = vmatprep.subr.mxu0 0.0
  %662 = vmatpush1.msra.mxu0 0.0
  %663 = vmatprep.subr.mxu0 0.0
  %664 = vmatpush1.msra.mxu0 0.0
  %665 = vmatprep.subr.mxu0 0.0
  %666 = vmatpush1.msra.mxu0 0.0
  %667 = vmatprep.subr.mxu0 0.0
  %668 = vmatpush1.msra.mxu0 0.0
  %669 = vmatprep.subr.mxu0 0.0
  %670 = vmatpush1.msra.mxu0 0.0
  %671 = vmatprep.subr.mxu0 0.0
  %672 = vmatpush1.msra.mxu0 0.0
  %673 = vmatprep.subr.mxu0 0.0
  %674 = vmatpush1.msra.mxu0 0.0
  %675 = vmatprep.subr.mxu0 0.0
  %676 = vmatpush1.msra.mxu0 0.0
  %677 = vmatprep.subr.mxu0 0.0
  %678 = vmatpush1.msra.mxu0 0.0
  %679 = vmatprep.subr.mxu0 0.0
  %680 = vmatpush1.msra.mxu0 0.0
  %681 = vmatprep.subr.mxu0 0.0
  %682 = vmatpush1.msra.mxu0 0.0
  %683 = vmatprep.subr.mxu0 0.0
  %684 = vmatpush1.msra.mxu0 0.0
  %685 = vmatprep.subr.mxu0 0.0
  %686 = vmatpush1.msra.mxu0 0.0
  %687 = vmatprep.subr.mxu0 0.0
  %688 = vmatpush1.msra.mxu0 0.0
  %689 = vmatprep.subr.mxu0 0.0
  %690 = vmatpush1.msra.mxu0 0.0
  %691 = vmatprep.subr.mxu0 0.0
  %692 = vmatpush1.msra.mxu0 0.0
  %693 = vmatprep.subr.mxu0 0.0
  %694 = vmatpush1.msra.mxu0 0.0
  %695 = vmatprep.subr.mxu0 0.0
  %696 = vmatpush1.msra.mxu0 0.0
  %697 = vmatprep.subr.mxu0 0.0
  %698 = vmatpush1.msra.mxu0 0.0
  %699 = vmatprep.subr.mxu0 0.0
  %700 = vmatpush1.msra.mxu0 0.0
  %701 = vmatprep.subr.mxu0 0.0
  %702 = vmatpush1.msra.mxu0 0.0
  %703 = vmatprep.subr.mxu0 0.0
  %704 = vmatpush1.msra.mxu0 0.0
  %705 = vmatprep.subr.mxu0 0.0
  %706 = vmatpush1.msra.mxu0 0.0
  %707 = vmatprep.subr.mxu0 0.0
  %708 = vmatpush1.msra.mxu0 0.0
  %709 = vmatprep.mubr.f32.mxu0 0.0
  %710 = vmatmul.mubr.f32.gmra.mrb[0].mxu0 %v634
  %v711 = vpop.f32.mrb[0].mxu0
  %v712 = vadd.f32 %v616, %v711
  %v713 = vpop.f32.mrb[0].mxu0
  %714 = vmatprep.mubr.f32.mxu0 0.0
  %715 = vmatmul.mubr.f32.gmra.mrb[0].mxu0 %v637
  %v716 = vpop.f32.mrb[0].mxu0
  %v717 = vadd.f32 %v621, %v716
  %v718 = vpop.f32.mrb[0].mxu0
  %719 = vmatprep.mubr.f32.mxu0 0.0
  %720 = vmatmul.mubr.f32.gmra.mrb[0].mxu0 %v640
  %v721 = vpop.f32.mrb[0].mxu0
  %v722 = vadd.f32 %v626, %v721
  %v723 = vpop.f32.mrb[0].mxu0
  %724 = vmatprep.mubr.f32.mxu0 0.0
  %725 = vmatmul.mubr.f32.gmra.mrb[0].mxu0 %v643
  %v726 = vpop.f32.mrb[0].mxu0
  %v727 = vadd.f32 %v631, %v726
  %v728 = vpop.f32.mrb[0].mxu0
  %729 = vdwg.mxu0
  %vm730 = vcmp.ge.f32.partialorder %v712, 0.0
  %vm731 = vcmp.ge.f32.partialorder %v717, 0.0
  %vm732 = vcmp.ge.f32.partialorder %v722, 0.0
  %vm733 = vcmp.ge.f32.partialorder %v727, 0.0
  %v734 = vmul.f32 %v712, 0.5
  %v735 = vmul.f32 %v717, 0.5
  %v736 = vmul.f32 %v722, 0.5
  %v737 = vmul.f32 %v727, 0.5
  %v738 = vsel %vm730, %v712, %v734
  %v739 = vsel %vm731, %v717, %v735
  %v740 = vsel %vm732, %v722, %v736
  %v741 = vsel %vm733, %v727, %v737
  %v742 = vld [vmem:[%s11] sm:$0xff]
  %v743 = vld [vmem:[%s11 + $0x8] sm:$0xff]
  %v744 = vld [vmem:[%s12] sm:$0xff]
  %v745 = vld [vmem:[%s12 + $0x8] sm:$0xff]
  %747 = vset.pattern.permute.xlu0 0
  %748 = vperm.xlu0 %747, %v744
  %v749 = vpop.permute.xlu0 %748
  %752 = vset.pattern.permute.xlu0 0
  %753 = vperm.xlu0 %752, %v745
  %v754 = vpop.permute.xlu0 %753
  %v757 = vsel %vm276, %v742, 0
  %v760 = vsel %vm276, %v743, 0
  %762 = vmatprep.subr.mxu0 0.0
  %763 = vmatpush1.msra.mxu0 %v738
  %764 = vmatprep.subr.mxu0 0.0
  %765 = vmatpush1.msra.mxu0 %v739
  %766 = vmatprep.subr.mxu0 0.0
  %767 = vmatpush1.msra.mxu0 %v740
  %768 = vmatprep.subr.mxu0 0.0
  %769 = vmatpush1.msra.mxu0 %v741
  %770 = vmatprep.subr.mxu0 0.0
  %771 = vmatpush1.msra.mxu0 0.0
  %772 = vmatprep.subr.mxu0 0.0
  %773 = vmatpush1.msra.mxu0 0.0
  %774 = vmatprep.subr.mxu0 0.0
  %775 = vmatpush1.msra.mxu0 0.0
  %776 = vmatprep.subr.mxu0 0.0
  %777 = vmatpush1.msra.mxu0 0.0
  %778 = vmatprep.subr.mxu0 0.0
  %779 = vmatpush1.msra.mxu0 0.0
  %780 = vmatprep.subr.mxu0 0.0
  %781 = vmatpush1.msra.mxu0 0.0
  %782 = vmatprep.subr.mxu0 0.0
  %783 = vmatpush1.msra.mxu0 0.0
  %784 = vmatprep.subr.mxu0 0.0
  %785 = vmatpush1.msra.mxu0 0.0
  %786 = vmatprep.subr.mxu0 0.0
  %787 = vmatpush1.msra.mxu0 0.0
  %788 = vmatprep.subr.mxu0 0.0
  %789 = vmatpush1.msra.mxu0 0.0
  %790 = vmatprep.subr.mxu0 0.0
  %791 = vmatpush1.msra.mxu0 0.0
  %792 = vmatprep.subr.mxu0 0.0
  %793 = vmatpush1.msra.mxu0 0.0
  %794 = vmatprep.subr.mxu0 0.0
  %795 = vmatpush1.msra.mxu0 0.0
  %796 = vmatprep.subr.mxu0 0.0
  %797 = vmatpush1.msra.mxu0 0.0
  %798 = vmatprep.subr.mxu0 0.0
  %799 = vmatpush1.msra.mxu0 0.0
  %800 = vmatprep.subr.mxu0 0.0
  %801 = vmatpush1.msra.mxu0 0.0
  %802 = vmatprep.subr.mxu0 0.0
  %803 = vmatpush1.msra.mxu0 0.0
  %804 = vmatprep.subr.mxu0 0.0
  %805 = vmatpush1.msra.mxu0 0.0
  %806 = vmatprep.subr.mxu0 0.0
  %807 = vmatpush1.msra.mxu0 0.0
  %808 = vmatprep.subr.mxu0 0.0
  %809 = vmatpush1.msra.mxu0 0.0
  %810 = vmatprep.subr.mxu0 0.0
  %811 = vmatpush1.msra.mxu0 0.0
  %812 = vmatprep.subr.mxu0 0.0
  %813 = vmatpush1.msra.mxu0 0.0
  %814 = vmatprep.subr.mxu0 0.0
  %815 = vmatpush1.msra.mxu0 0.0
  %816 = vmatprep.subr.mxu0 0.0
  %817 = vmatpush1.msra.mxu0 0.0
  %818 = vmatprep.subr.mxu0 0.0
  %819 = vmatpush1.msra.mxu0 0.0
  %820 = vmatprep.subr.mxu0 0.0
  %821 = vmatpush1.msra.mxu0 0.0
  %822 = vmatprep.subr.mxu0 0.0
  %823 = vmatpush1.msra.mxu0 0.0
  %824 = vmatprep.subr.mxu0 0.0
  %825 = vmatpush1.msra.mxu0 0.0
  %826 = vmatprep.mubr.f32.mxu0 0.0
  %827 = vmatmul.mubr.f32.gmra.mrb[0].mxu0 %v757
  %v828 = vpop.f32.mrb[0].mxu0
  %v829 = vadd.f32 %v749, %v828
  %v830 = vpop.f32.mrb[0].mxu0
  %831 = vmatprep.mubr.f32.mxu0 0.0
  %832 = vmatmul.mubr.f32.gmra.mrb[0].mxu0 %v760
  %v833 = vpop.f32.mrb[0].mxu0
  %v834 = vadd.f32 %v754, %v833
  %v835 = vpop.f32.mrb[0].mxu0
  %836 = vdwg.mxu0
  %837 = vst [vmem:[%s13] sm:$0xff] %v829
  %838 = vst [vmem:[%s13 + $0x8] sm:$0xff] %v834
  // Predicated region
  $region54: #{ae_forward.1} parent=0 // pred_check
    _
  $region55: #{ae_forward.1} parent=0 // pred_check_branch
    %840 = sbr.rel (0) target = $region57
  $region56: #{ae_forward.1} parent=0 // pred_region
    _
  $region57: #{ae_forward.1} parent=0 // pred_fallthru
    _
  // Predicated region
  $region58: #{ae_forward.1} parent=0 // pred_check
    _
  $region59: #{ae_forward.1} parent=0 // pred_check_branch
    %842 = sbr.rel (0) target = $region61
  $region60: #{ae_forward.1} parent=0 // pred_region
    _
  $region61: #{ae_forward.1} parent=0 // pred_fallthru
    _
  // Predicated region
  $region62: #{ae_forward.1} parent=0 // pred_check
    _
  $region63: #{ae_forward.1} parent=0 // pred_check_branch
    %844 = sbr.rel (0) target = $region65
  $region64: #{ae_forward.1} parent=0 // pred_region
    _
  $region65: #{ae_forward.1} parent=0 // pred_fallthru
    _
  // Predicated region
  $region66: #{ae_forward.1} parent=0 // pred_check
    _
  $region67: #{ae_forward.1} parent=0 // pred_check_branch
    %846 = sbr.rel (0) target = $region69
  $region68: #{ae_forward.1} parent=0 // pred_region
    _
  $region69: #{ae_forward.1} parent=0 // pred_fallthru
    _

</llo_original>
